<compile_context>
chip_gen: v7x
topology: tpu7x:2x2x1
jax: 0.10.0
libtpu: 0.0.40
codegen_flags: <defaults>
</compile_context>

<pallas_src>
import jax
import jax.numpy as jnp
import numpy as np
from jax.experimental import pallas as pl
from jax.experimental.pallas import tpu as pltpu

_NEG = -1e30  # finite mask sentinel (safe with bf16 on the score path; -inf is not)


def _multitask_attention_kernel(x_ref, mask_ref, wat_ref, wot_ref, bom_ref, lane_ref,
                                alphas_ref, prob_ref, pred_ref):
    B, S, H = x_ref.shape
    T = wat_ref.shape[1]
    TO = wot_ref.shape[1]
    f32 = jnp.float32
    bf16 = jnp.bfloat16

    x = x_ref[...]                         # (B,S,H) bf16  (MXU operand dtype)
    mask = mask_ref[...]                   # (B,S)   f32   {0,1}

    # ---- similarities: one plain 2-D MXU matmul against pre-transposed wa (H,T).
    sims = jnp.dot(x.reshape(B * S, H), wat_ref[...],
                   preferred_element_type=f32).reshape(B, S, T)        # (B,S,T) f32

    # ---- allennlp masked_softmax over S (non-mem-efficient variant), the two
    #      normalizations folded into one divide; max-subtract dropped (exact no-op here).
    m = mask[:, :, None]                                               # (B,S,1)
    e = jnp.exp(sims * m)
    n = e * m
    denom = (jnp.sum(n, axis=1, keepdims=True)
             + 1e-13 * jnp.sum(e, axis=1, keepdims=True))
    alphas = n / denom                     # exact divide: keeps the pred path deterministic
    alphas_ref[...] = alphas               # (B,S,T)

    # ---- weighted_sum(X, alphas): batched MXU matmul, bf16 operands, f32 accumulate.
    att = jnp.einsum('bst,bsh->bth', alphas.astype(bf16), x,
                     preferred_element_type=f32)                       # (B,T,H) f32

    # ---- all T output heads in ONE plain 2-D MXU matmul against the stacked (H,T*O)
    #      weights; bias + block-diagonal "keep own O columns" mask are a single static
    #      additive constant bom (T,T*O): bias on own block, -1e30 elsewhere.
    dense = jnp.dot(att.reshape(B * T, H).astype(bf16), wot_ref[...],
                    preferred_element_type=f32)                        # (B*T,T*O) f32
    scores_m = dense.reshape(B, T, TO) + bom_ref[...][None]            # (B,T,T*O) f32

    # ---- per-head softmax (masked lanes underflow to exactly 0) and argmax.
    mx = jnp.max(scores_m, axis=-1, keepdims=True)                     # reused by argmax
    pe = jnp.exp(scores_m - mx)
    inv = pl.reciprocal(jnp.sum(pe, axis=-1, keepdims=True), approx=True)   # EUP slot
    prob_ref[...] = jnp.sum(pe * inv, axis=1)        # disjoint blocks -> concat prob_vec

    # ---- pred: first-occurrence argmax within each head's O block.  lane_ref holds the
    #      static (column % O) indices, hoisted to the wrapper (no in-kernel iota).
    cand = jnp.where(scores_m == mx, lane_ref[...][:, None, :], TO)    # (B,T,T*O) int32
    pred_ref[...] = jnp.min(cand, axis=-1).astype(jnp.int32)           # (B,T)


def multitask_attention_forward(X, mask, wa, wo, bo, event_types=None):
    """MultitaskAttention.forward (y=None, seq_feats=None, pred_as_seq=False).

    Returns (alphas, prob, pred, prob_vec, loss); alphas/prob/pred are dicts keyed by
    event type (mirroring the torch OrderedDicts) and prob_vec = concat(prob, dim=-1).
    """
    B, S, H = X.shape
    T, O, _ = wo.shape
    if event_types is None:
        event_types = [str(i) for i in range(T)]
    f32, bf16 = jnp.float32, jnp.bfloat16

    # MXU operands pre-transposed to (K,N) so Mosaic sees plain (M,K)x(K,N) matmuls,
    # cast to the native MXU input dtype (bf16 on v5e/v6e/v7x).  Free at trace time.
    wat = jnp.asarray(wa, f32).T.astype(bf16)                                 # (H, T)
    wot = jnp.reshape(jnp.asarray(wo, f32), (T * O, H)).T.astype(bf16)        # (H, T*O)

    # Static block-diagonal structure hoisted out of the kernel body:
    #   bom      : per-head bias on own-block columns, -1e30 elsewhere        (T, T*O)
    #   lane_mod : column % O, the within-block argmax index                  (1, T*O)
    col = np.arange(T * O)
    sel = jnp.asarray((col[None, :] // O) == np.arange(T)[:, None])
    bom = jnp.where(sel,
                    jnp.broadcast_to(jnp.reshape(jnp.asarray(bo, f32), (1, T * O)),
                                     (T, T * O)),
                    _NEG)
    lane_mod = jnp.asarray((col % O)[None, :], jnp.int32)

    vmem = pl.BlockSpec(memory_space=pltpu.MemorySpace.VMEM)
    alphas, prob_vec, pred = pl.pallas_call(
        _multitask_attention_kernel,
        out_shape=(
            jax.ShapeDtypeStruct((B, S, T), f32),      # attention weights
            jax.ShapeDtypeStruct((B, T * O), f32),     # prob_vec (already concatenated)
            jax.ShapeDtypeStruct((B, T), jnp.int32),   # per-event-type argmax
        ),
        in_specs=[vmem] * 6,
        out_specs=(vmem, vmem, vmem),
    )(jnp.asarray(X, f32).astype(bf16), jnp.asarray(mask, f32), wat, wot, bom, lane_mod)

    # y=None path: every per-task loss is torch.Tensor([0]); any reduction of zeros is 0.
    # TODO(synk): training path (y -> per-task CrossEntropyLoss + loss_reduction) not implemented.
    # TODO(synk): pred_as_seq=True scatter path, bilinear attention, CnnEncoder, seq_feats and
    #             heterogeneous num_tags per event type are not implemented (kernel assumes
    #             dot-product attention and uniform num_tags == O).
    loss = jnp.zeros((1,), f32)

    alphas_d = {t: alphas[:, :, i] for i, t in enumerate(event_types)}
    prob_d = {t: prob_vec[:, i * O:(i + 1) * O] for i, t in enumerate(event_types)}
    pred_d = {t: pred[:, i] for i, t in enumerate(event_types)}
    return alphas_d, prob_d, pred_d, prob_vec, loss


def _mirror_reference(X, mask, wa, wo, bo):
    """Pure-JAX replica of the kernel's exact numerics (bf16 MXU operands, f32 math).
    Used for the tight checks and for a tie-safe pred comparison."""
    B, S, H = X.shape
    T, O, _ = wo.shape
    f32, bf16 = jnp.float32, jnp.bfloat16
    xb = jnp.asarray(X, f32).astype(bf16)
    wat = jnp.asarray(wa, f32).T.astype(bf16)
    wot = jnp.reshape(jnp.asarray(wo, f32), (T * O, H)).T.astype(bf16)
    sims = jnp.dot(xb.reshape(B * S, H), wat,
                   preferred_element_type=f32).reshape(B, S, T)
    m = jnp.asarray(mask, f32)[:, :, None]
    e = jnp.exp(sims * m)
    n = e * m
    alphas = n / (n.sum(1, keepdims=True) + 1e-13 * e.sum(1, keepdims=True))
    att = jnp.einsum('bst,bsh->bth', alphas.astype(bf16), xb, preferred_element_type=f32)
    dense = jnp.dot(att.reshape(B * T, H).astype(bf16), wot, preferred_element_type=f32)
    col = jnp.arange(T * O)
    sel = (col[None, :] // O) == jnp.arange(T)[:, None]
    bom = jnp.where(sel, jnp.broadcast_to(jnp.asarray(bo, f32).reshape(1, T * O),
                                          (T, T * O)), _NEG)
    scores_m = dense.reshape(B, T, T * O) + bom[None]
    mx = scores_m.max(-1, keepdims=True)
    pe = jnp.exp(scores_m - mx)
    prob_vec = (pe / pe.sum(-1, keepdims=True)).sum(1)
    cand = jnp.where(scores_m == mx, (col % O)[None, None, :], T * O)
    pred = cand.min(-1).astype(jnp.int32)
    return alphas, prob_vec, pred


def _torch_reference(X, mask, wa, wo, bo):
    """Pure-f32 JAX reference mirroring the torch forward (semantic fidelity check)."""
    B, S, H = X.shape
    T, O, _ = wo.shape
    sims = jnp.einsum('bsh,th->bts', X, wa)                        # (B,T,S)
    m = mask[:, None, :]
    p = jax.nn.softmax(sims * m, axis=-1) * m                      # allennlp masked_softmax
    alphas = p / (p.sum(-1, keepdims=True) + 1e-13)
    att = jnp.einsum('bts,bsh->bth', alphas, X)                    # weighted_sum
    scores = jnp.einsum('bth,toh->bto', att, wo) + bo[None]        # per-event out_layer
    prob = jax.nn.softmax(scores, axis=-1)
    return alphas, prob, prob.reshape(B, T * O)


if __name__ == "__main__":
    # Small shapes consistent with the module's forward.
    B, S, H = 2, 8, 32          # batch, max_seq_len, embed_size
    T, O = 4, 2                 # number of event types, num_tags per event type

    key = jax.random.PRNGKey(0)
    k1, k2, k3, k4 = jax.random.split(key, 4)
    wa = jax.random.normal(k1, (T, H), jnp.float32)                    # per-event attention vectors
    wo = jax.random.normal(k2, (T, O, H), jnp.float32) / jnp.sqrt(H)   # per-event out_layer weights
    bo = jax.random.normal(k3, (T, O), jnp.float32) * 0.1              # per-event out_layer biases
    X = jax.random.normal(k4, (B, S, H), jnp.float32)
    mask = jnp.ones((B, S), jnp.float32).at[1, 5:].set(0.0)            # pad tail of sample 1

    event_types = [f"evt{i}" for i in range(T)]
    alphas_d, prob_d, pred_d, prob_vec, loss = multitask_attention_forward(
        X, mask, wa, wo, bo, event_types)
    jax.block_until_ready((alphas_d, prob_d, pred_d, prob_vec, loss))

    # Tight check against a pure-JAX replica of the kernel numerics (bf16 MXU path);
    # coarse check against the f32 torch-faithful math (bf16 operand quantization).
    a_mir, pv_mir, pr_mir = _mirror_reference(X, mask, wa, wo, bo)
    a_f32, p_f32, pv_f32 = _torch_reference(X, mask, wa, wo, bo)

    assert prob_vec.shape == (B, T * O) and loss.shape == (1,)
    assert bool(jnp.allclose(prob_vec, pv_mir, atol=2e-2, rtol=2e-2))   # approx-recip slack
    assert bool(jnp.allclose(prob_vec, pv_f32, atol=1e-1))              # bf16-vs-f32 fidelity
    for i, t in enumerate(event_types):
        assert alphas_d[t].shape == (B, S)
        assert prob_d[t].shape == (B, O)
        assert pred_d[t].shape == (B,)
        assert bool(jnp.allclose(alphas_d[t], a_mir[:, :, i], atol=1e-4, rtol=1e-4))
        assert bool(jnp.allclose(alphas_d[t], a_f32[:, i, :], atol=1e-1))
        assert bool(jnp.allclose(prob_d[t], p_f32[:, i, :], atol=1e-1))
        assert bool(jnp.all(pred_d[t] == pr_mir[:, i]))
        assert bool(jnp.allclose(prob_d[t].sum(-1), 1.0, atol=2e-2))    # proper distribution
    assert bool(jnp.all(loss == 0.0))

    print("KERNEL_OK")
</pallas_src>

<mosaic_0001>
module attributes {stable_mosaic.version = 11 : i64} {
  func.func @_multitask_attention_kernel(%arg0: memref<2x8x32xbf16, #tpu.memory_space<vmem>>, %arg1: memref<2x8xf32, #tpu.memory_space<vmem>>, %arg2: memref<32x4xbf16, #tpu.memory_space<vmem>>, %arg3: memref<32x8xbf16, #tpu.memory_space<vmem>>, %arg4: memref<4x8xf32, #tpu.memory_space<vmem>>, %arg5: memref<1x8xi32, #tpu.memory_space<vmem>>, %arg6: memref<2x8x4xf32, #tpu.memory_space<vmem>>, %arg7: memref<2x8xf32, #tpu.memory_space<vmem>>, %arg8: memref<2x4xi32, #tpu.memory_space<vmem>>) attributes {dimension_semantics = [], scalar_prefetch = 0 : i64, scratch_operands = 0 : i64, tpu.core_type = #tpu.core_type<tc>} {
    %c0 = arith.constant 0 : index
    %c0_0 = arith.constant 0 : index
    %c0_1 = arith.constant 0 : index
    %0 = vector.load %arg0[%c0, %c0_0, %c0_1] : memref<2x8x32xbf16, #tpu.memory_space<vmem>>, vector<2x8x32xbf16>
    %c0_2 = arith.constant 0 : index
    %c0_3 = arith.constant 0 : index
    %1 = vector.load %arg1[%c0_2, %c0_3] : memref<2x8xf32, #tpu.memory_space<vmem>>, vector<2x8xf32>
    %2 = vector.shape_cast %0 : vector<2x8x32xbf16> to vector<16x32xbf16>
    %c0_4 = arith.constant 0 : index
    %c0_5 = arith.constant 0 : index
    %3 = vector.load %arg2[%c0_4, %c0_5] : memref<32x4xbf16, #tpu.memory_space<vmem>>, vector<32x4xbf16>
    %cst = arith.constant dense<0.000000e+00> : vector<16x4xf32>
    %4 = tpu.matmul %2, %3, %cst {dimension_numbers = #tpu.dot_dimension_numbers<[1], [0], [0], [1], [0, 0, 1, 1], [], []>} : vector<16x32xbf16>, vector<32x4xbf16>, vector<16x4xf32> -> vector<16x4xf32>
    %5 = vector.shape_cast %4 : vector<16x4xf32> to vector<2x8x4xf32>
    %6 = vector.shape_cast %1 : vector<2x8xf32> to vector<2x8x1xf32>
    %7 = vector.broadcast %6 : vector<2x8x1xf32> to vector<2x8x4xf32>
    %8 = arith.mulf %5, %7 : vector<2x8x4xf32>
    %9 = math.exp %8 : vector<2x8x4xf32>
    %10 = vector.broadcast %6 : vector<2x8x1xf32> to vector<2x8x4xf32>
    %11 = arith.mulf %9, %10 : vector<2x8x4xf32>
    %cst_6 = arith.constant dense<0.000000e+00> : vector<2x4xf32>
    %12 = vector.multi_reduction <add>, %11, %cst_6 [1] : vector<2x8x4xf32> to vector<2x4xf32>
    %13 = vector.shape_cast %12 : vector<2x4xf32> to vector<2x1x4xf32>
    %cst_7 = arith.constant dense<0.000000e+00> : vector<2x4xf32>
    %14 = vector.multi_reduction <add>, %9, %cst_7 [1] : vector<2x8x4xf32> to vector<2x4xf32>
    %15 = vector.shape_cast %14 : vector<2x4xf32> to vector<2x1x4xf32>
    %cst_8 = arith.constant 9.99999982E-14 : f32
    %16 = vector.broadcast %cst_8 : f32 to vector<2x1x4xf32>
    %17 = arith.mulf %16, %15 : vector<2x1x4xf32>
    %18 = arith.addf %13, %17 : vector<2x1x4xf32>
    %19 = vector.broadcast %18 : vector<2x1x4xf32> to vector<2x8x4xf32>
    %20 = arith.divf %11, %19 : vector<2x8x4xf32>
    %c0_9 = arith.constant 0 : index
    %c0_10 = arith.constant 0 : index
    %c0_11 = arith.constant 0 : index
    %21 = vector.load %arg6[%c0_9, %c0_10, %c0_11] : memref<2x8x4xf32, #tpu.memory_space<vmem>>, vector<2x8x4xf32>
    tpu.vector_store %arg6[%c0_9, %c0_10, %c0_11], %20 {strides = array<i32>} : memref<2x8x4xf32, #tpu.memory_space<vmem>>, vector<2x8x4xf32>,
    %22 = arith.truncf %20 : vector<2x8x4xf32> to vector<2x8x4xbf16>
    "tpu.trace_start"() <{level = 10 : i32, message = "bst,bsh->bth"}> : () -> ()
    %cst_12 = arith.constant dense<0.000000e+00> : vector<2x4x32xf32>
    %23 = tpu.matmul %22, %0, %cst_12 {dimension_numbers = #tpu.dot_dimension_numbers<[1], [1], [2], [2], [0, 0, 0, 2, 1, 2], [0], [0]>} : vector<2x8x4xbf16>, vector<2x8x32xbf16>, vector<2x4x32xf32> -> vector<2x4x32xf32>
    "tpu.trace_stop"() : () -> ()
    %24 = vector.shape_cast %23 : vector<2x4x32xf32> to vector<8x32xf32>
    %25 = arith.truncf %24 : vector<8x32xf32> to vector<8x32xbf16>
    %c0_13 = arith.constant 0 : index
    %c0_14 = arith.constant 0 : index
    %26 = vector.load %arg3[%c0_13, %c0_14] : memref<32x8xbf16, #tpu.memory_space<vmem>>, vector<32x8xbf16>
    %cst_15 = arith.constant dense<0.000000e+00> : vector<8x8xf32>
    %27 = tpu.matmul %25, %26, %cst_15 {dimension_numbers = #tpu.dot_dimension_numbers<[1], [0], [0], [1], [0, 0, 1, 1], [], []>} : vector<8x32xbf16>, vector<32x8xbf16>, vector<8x8xf32> -> vector<8x8xf32>
    %28 = vector.shape_cast %27 : vector<8x8xf32> to vector<2x4x8xf32>
    %c0_16 = arith.constant 0 : index
    %c0_17 = arith.constant 0 : index
    %29 = vector.load %arg4[%c0_16, %c0_17] : memref<4x8xf32, #tpu.memory_space<vmem>>, vector<4x8xf32>
    %30 = vector.shape_cast %29 : vector<4x8xf32> to vector<1x4x8xf32>
    %31 = vector.broadcast %30 : vector<1x4x8xf32> to vector<2x4x8xf32>
    %32 = arith.addf %28, %31 : vector<2x4x8xf32>
    %cst_18 = arith.constant dense<0xFF800000> : vector<2x4xf32>
    %33 = vector.multi_reduction <maximumf>, %32, %cst_18 [2] : vector<2x4x8xf32> to vector<2x4xf32>
    %34 = vector.shape_cast %33 : vector<2x4xf32> to vector<2x4x1xf32>
    %35 = vector.broadcast %34 : vector<2x4x1xf32> to vector<2x4x8xf32>
    %36 = arith.subf %32, %35 : vector<2x4x8xf32>
    %37 = math.exp %36 : vector<2x4x8xf32>
    %cst_19 = arith.constant dense<0.000000e+00> : vector<2x4xf32>
    %38 = vector.multi_reduction <add>, %37, %cst_19 [2] : vector<2x4x8xf32> to vector<2x4xf32>
    %39 = vector.shape_cast %38 : vector<2x4xf32> to vector<2x4x1xf32>
    %40 = tpu.reciprocal %39 {approx = true} : vector<2x4x1xf32> -> vector<2x4x1xf32>
    %41 = vector.broadcast %40 : vector<2x4x1xf32> to vector<2x4x8xf32>
    %42 = arith.mulf %37, %41 : vector<2x4x8xf32>
    %cst_20 = arith.constant dense<0.000000e+00> : vector<2x8xf32>
    %43 = vector.multi_reduction <add>, %42, %cst_20 [1] : vector<2x4x8xf32> to vector<2x8xf32>
    %c0_21 = arith.constant 0 : index
    %c0_22 = arith.constant 0 : index
    %44 = vector.load %arg7[%c0_21, %c0_22] : memref<2x8xf32, #tpu.memory_space<vmem>>, vector<2x8xf32>
    tpu.vector_store %arg7[%c0_21, %c0_22], %43 {strides = array<i32>} : memref<2x8xf32, #tpu.memory_space<vmem>>, vector<2x8xf32>,
    %45 = vector.broadcast %34 : vector<2x4x1xf32> to vector<2x4x8xf32>
    %46 = arith.cmpf oeq, %32, %45 : vector<2x4x8xf32>
    %c0_23 = arith.constant 0 : index
    %c0_24 = arith.constant 0 : index
    %47 = vector.load %arg5[%c0_23, %c0_24] : memref<1x8xi32, #tpu.memory_space<vmem>>, vector<1x8xi32>
    %48 = vector.shape_cast %47 : vector<1x8xi32> to vector<1x1x8xi32>
    %c8_i32 = arith.constant 8 : i32
    %49 = vector.shape_cast %48 : vector<1x1x8xi32> to vector<1x1x8xi32>
    %50 = vector.broadcast %49 : vector<1x1x8xi32> to vector<2x4x8xi32>
    %51 = vector.broadcast %c8_i32 : i32 to vector<2x4x8xi32>
    %52 = arith.select %46, %50, %51 : vector<2x4x8xi1>, vector<2x4x8xi32>
    %cst_25 = arith.constant dense<2147483647> : vector<2x4xi32>
    %53 = vector.multi_reduction <minsi>, %52, %cst_25 [2] : vector<2x4x8xi32> to vector<2x4xi32>
    %c0_26 = arith.constant 0 : index
    %c0_27 = arith.constant 0 : index
    %54 = vector.load %arg8[%c0_26, %c0_27] : memref<2x4xi32, #tpu.memory_space<vmem>>, vector<2x4xi32>
    tpu.vector_store %arg8[%c0_26, %c0_27], %53 {strides = array<i32>} : memref<2x4xi32, #tpu.memory_space<vmem>>, vector<2x4xi32>,
    return
  }
}

</mosaic_0001>

<llo_original>
// kernel: tpu_custom_call.1
$region0: #{tpu_custom_call.1}
  #allocation0 [shape = 'u32[]', space=smem, size = 0x4, offset = 0x4, fixed_abs, tag = 'smem constant byte address 0x4 - core index']
  #allocation1 [shape = 'u32[144,128]{1,0:T(1,128)}', space=vmem, size = 0x12000, scoped, tag = 'internal scratch']
  %s0 = inlined_call_operand.vmem [shape: bf16[2,8,32], index: 0, kind: input, shape index: {}]
  %s1 = inlined_call_operand.vmem [shape: f32[2,8], index: 1, kind: input, shape index: {}]
  %s2 = inlined_call_operand.vmem [shape: bf16[32,4], index: 2, kind: input, shape index: {}]
  %s3 = inlined_call_operand.vmem [shape: bf16[32,8], index: 3, kind: input, shape index: {}]
  %s4 = inlined_call_operand.vmem [shape: f32[4,8], index: 4, kind: input, shape index: {}]
  %s5 = inlined_call_operand.vmem [shape: s32[1,8], index: 5, kind: input, shape index: {}]
  %s6 = inlined_call_operand.vmem [shape: f32[2,8,4], index: 6, kind: output, shape index: {0}]
  %s7 = inlined_call_operand.hbm [shape: f32[2,8], index: 7, kind: output, shape index: {1}]
  %s8 = inlined_call_operand.hbm [shape: s32[2,4], index: 8, kind: output, shape index: {2}]
  %9 = xla_tuple %s6, %s7, %s8
  %s10 = sld [smem:[#allocation0]]
  $region50: #{tpu_custom_call.1} parent=0
    _
  %s12 = ssub.s32 1, %s10
  %s13 = scalar_select 0, %s12, %s10
  $region1: #{tpu_custom_call.1} parent=0
    #allocation2 [shape = 'u8[1024]{0}', space=vmem, size = 0x400, scoped, tag = 'output window, operand 1, single buffered']
    #allocation3 [shape = 's32[1]{0}', space=sflag, size = 0x4, scoped, tag = 'scoped memory for tpu_custom_call.1']
    #allocation4 [shape = 'u8[1024]{0}', space=vmem, size = 0x400, scoped, tag = 'output window, operand 2, single buffered']
    #allocation5 [shape = 's32[1]{0}', space=sflag, size = 0x4, scoped, tag = 'scoped memory for tpu_custom_call.1']
    %14 = vsyncpa [#allocation3], 0
    %15 = vsyncpa [#allocation5], 0
    // Predicated region
    $region2: #{tpu_custom_call.1} parent=1 // pred_check
      _
    $region3: #{tpu_custom_call.1} parent=1 // pred_check_branch
      %17 = sbr.rel (0) target = $region5
    $region4: #{tpu_custom_call.1} parent=1 // pred_region
      _
    $region5: #{tpu_custom_call.1} parent=1 // pred_fallthru
      _
    // Predicated region
    $region6: #{tpu_custom_call.1} parent=1 // pred_check
      _
    $region7: #{tpu_custom_call.1} parent=1 // pred_check_branch
      %19 = sbr.rel (0) target = $region9
    $region8: #{tpu_custom_call.1} parent=1 // pred_region
      _
    $region9: #{tpu_custom_call.1} parent=1 // pred_fallthru
      _
    // Predicated region
    $region10: #{tpu_custom_call.1} parent=1 // pred_check
      _
    $region11: #{tpu_custom_call.1} parent=1 // pred_check_branch
      %21 = sbr.rel (0) target = $region13
    $region12: #{tpu_custom_call.1} parent=1 // pred_region
      _
    $region13: #{tpu_custom_call.1} parent=1 // pred_fallthru
      _
    // Predicated region
    $region14: #{tpu_custom_call.1} parent=1 // pred_check
      _
    $region15: #{tpu_custom_call.1} parent=1 // pred_check_branch
      %23 = sbr.rel (0) target = $region17
    $region16: #{tpu_custom_call.1} parent=1 // pred_region
      _
    $region17: #{tpu_custom_call.1} parent=1 // pred_fallthru
      _
    // Predicated region
    $region18: #{tpu_custom_call.1} parent=1 // pred_check
      _
    $region19: #{tpu_custom_call.1} parent=1 // pred_check_branch
      %25 = sbr.rel (0) target = $region21
    $region20: #{tpu_custom_call.1} parent=1 // pred_region
      _
    $region21: #{tpu_custom_call.1} parent=1 // pred_fallthru
      _
    // Predicated region
    $region22: #{tpu_custom_call.1} parent=1 // pred_check
      _
    $region23: #{tpu_custom_call.1} parent=1 // pred_check_branch
      %27 = sbr.rel (0) target = $region25
    $region24: #{tpu_custom_call.1} parent=1 // pred_region
      _
    $region25: #{tpu_custom_call.1} parent=1 // pred_fallthru
      _
    %v29 = vld [vmem:[%s0] sm:$0xf]
    %v30 = vld [vmem:[%s0 + $0x4] sm:$0xf]
    %v31 = vld [vmem:[%s1] sm:$0x3]
    %v32 = vld [vmem:[%s2] sm:$0xf]
    %v33 = vld [vmem:[%s2 + $0x4] sm:$0xf]
    %v34 = vld [vmem:[%s2 + $0x8] sm:$0xf]
    %v35 = vld [vmem:[%s2 + $0xc] sm:$0xf]
    %v38 = vunpack.c.l.b16 %v29
    %v39 = vunpack.c.l.b16 %v30
    %v40 = vpack.c.b16 %v39, %v38
    %v45 = vunpack.c.l.b16 %v32
    %v46 = vunpack.c.l.b16 %v33
    %v47 = vunpack.c.l.b16 %v34
    %v48 = vunpack.c.l.b16 %v35
    %v49 = vpack.c.b16 %v46, %v45
    %v50 = vpack.c.b16 %v48, %v47
    %vm53 = vcmask 261120
    %v55 = vsel %vm53, %v40, 0
    %57 = vmatprep.subr.bf16.mxu0 0
    %58 = vmatpush1.bf16.msra.mxu0 %v49
    %59 = vmatprep.subr.bf16.mxu0 0
    %60 = vmatpush1.bf16.msra.mxu0 %v50
    %61 = vmatprep.subr.bf16.mxu0 0
    %62 = vmatpush1.bf16.msra.mxu0 0
    %63 = vmatprep.subr.bf16.mxu0 0
    %64 = vmatpush1.bf16.msra.mxu0 0
    %65 = vmatprep.subr.bf16.mxu0 0
    %66 = vmatpush1.bf16.msra.mxu0 0
    %67 = vmatprep.subr.bf16.mxu0 0
    %68 = vmatpush1.bf16.msra.mxu0 0
    %69 = vmatprep.subr.bf16.mxu0 0
    %70 = vmatpush1.bf16.msra.mxu0 0
    %71 = vmatprep.subr.bf16.mxu0 0
    %72 = vmatpush1.bf16.msra.mxu0 0
    %73 = vmatprep.subr.bf16.mxu0 0
    %74 = vmatpush1.bf16.msra.mxu0 0
    %75 = vmatprep.subr.bf16.mxu0 0
    %76 = vmatpush1.bf16.msra.mxu0 0
    %77 = vmatprep.subr.bf16.mxu0 0
    %78 = vmatpush1.bf16.msra.mxu0 0
    %79 = vmatprep.subr.bf16.mxu0 0
    %80 = vmatpush1.bf16.msra.mxu0 0
    %81 = vmatprep.subr.bf16.mxu0 0
    %82 = vmatpush1.bf16.msra.mxu0 0
    %83 = vmatprep.subr.bf16.mxu0 0
    %84 = vmatpush1.bf16.msra.mxu0 0
    %85 = vmatprep.subr.bf16.mxu0 0
    %86 = vmatpush1.bf16.msra.mxu0 0
    %87 = vmatprep.subr.bf16.mxu0 0
    %88 = vmatpush1.bf16.msra.mxu0 0
    %89 = vmatprep.mubr.bf16.mxu0 0
    %90 = vmatmul.mubr.bf16.gmra.mrb[0].mxu0 %v55
    %v91 = vpop.f32.mrb[0].mxu0
    %v92 = vadd.f32 0.0, %v91
    %v93 = vpop.f32.mrb[0].mxu0
    %v94 = vpop.f32.mrb[0].mxu0
    %v95 = vadd.f32 0.0, %v94
    %v96 = vpop.f32.mrb[0].mxu0
    %97 = vdwg.mxu0
    %v98 = vlaneseq
    %v99 = vshrl.u32 %v98, 7
    %v100 = vsub.s32 0, %v99
    %v101 = vrot.slane %v31, %v100
    %103 = vbcast.lane.b32.xlu0 %v101, 256
    %v104 = vpop.permute.xlu0 %103
    %v105 = vlaneseq
    %v106 = vshrl.u32 %v105, 7
    %v107 = vsub.s32 1, %v106
    %v108 = vrot.slane %v31, %v107
    %110 = vbcast.lane.b32.xlu0 %v108, 256
    %v111 = vpop.permute.xlu0 %110
    %v112 = vmul.f32 %v92, %v104
    %v113 = vmul.f32 %v95, %v111
    %v114 = vmul.f32 %v112, 1.442695
    %v115 = vpow.pop %v114
    %v116 = vmul.f32 %v113, 1.442695
    %v117 = vpow.pop %v116
    %v118 = vmul.f32 %v115, %v104
    %v119 = vmul.f32 %v117, %v111
    %vm120 = vcmask 31744
    %v121 = vsel %vm120, %v118, 0.0
    %v122 = vrot.slane %v121, 4
    %v123 = vadd.f32 %v121, %v122
    %v124 = vrot.slane %v123, 2
    %v125 = vadd.f32 %v123, %v124
    %v126 = vrot.slane %v125, 1
    %v127 = vadd.f32 %v125, %v126
    %v128 = vsel %vm120, %v119, 0.0
    %v129 = vrot.slane %v128, 4
    %v130 = vadd.f32 %v128, %v129
    %v131 = vrot.slane %v130, 2
    %v132 = vadd.f32 %v130, %v131
    %v133 = vrot.slane %v132, 1
    %v134 = vadd.f32 %v132, %v133
    %v135 = vsel %vm120, %v115, 0.0
    %v136 = vrot.slane %v135, 4
    %v137 = vadd.f32 %v135, %v136
    %v138 = vrot.slane %v137, 2
    %v139 = vadd.f32 %v137, %v138
    %v140 = vrot.slane %v139, 1
    %v141 = vadd.f32 %v139, %v140
    %v142 = vsel %vm120, %v117, 0.0
    %v143 = vrot.slane %v142, 4
    %v144 = vadd.f32 %v142, %v143
    %v145 = vrot.slane %v144, 2
    %v146 = vadd.f32 %v144, %v145
    %v147 = vrot.slane %v146, 1
    %v148 = vadd.f32 %v146, %v147
    %v149 = vmul.f32 %v141, 1e-13
    %v150 = vmul.f32 %v148, 1e-13
    %v151 = vadd.f32 %v127, %v149
    %v152 = vadd.f32 %v134, %v150
    %v153 = vrcp.pop %v151
    %v154 = vmul.f32 %v118, %v153
    %v155 = vrcp.pop %v152
    %v156 = vmul.f32 %v119, %v155
    %157 = vst.msk [vmem:[%s6] sm:$0xff] %vm120, %v154
    %158 = vst.msk [vmem:[%s6 + $0x8] sm:$0xff] %vm120, %v156
    %v159 = vpack.c.bf16 %v154, %v154
    %v160 = vpack.c.bf16 %v156, %v156
    %161 = vxpose.xlu0.c.b16.start [1/8] %v159, 128
    %162 = vxpose.xlu0.c.b16.cont [2/8] 0, 128
    %163 = vxpose.xlu0.c.b16.cont [3/8] 0, 128
    %164 = vxpose.xlu0.c.b16.cont [4/8] 0, 128
    %165 = vxpose.xlu0.c.b16.cont [5/8] 0, 128
    %166 = vxpose.xlu0.c.b16.cont [6/8] 0, 128
    %167 = vxpose.xlu0.c.b16.cont [7/8] 0, 128
    %168 = vxpose.xlu0.c.b16.end [8/8] 0, 128
    %v169 = vpop.trf.xlu0
    %v170 = vpop.trf.xlu0
    %v171 = vpop.trf.xlu0
    %v172 = vpop.trf.xlu0
    %v173 = vpop.trf.xlu0
    %v174 = vpop.trf.xlu0
    %v175 = vpop.trf.xlu0
    %v176 = vpop.trf.xlu0
    %vm177 = vcmask 64512
    %v179 = vsel %vm177, %v169, 0
    %vm181 = vcmask 1043456
    %v183 = vsel %vm181, %v29, 0
    %185 = vmatprep.subr.bf16.mxu0 0
    %186 = vmatpush1.bf16.msra.mxu0 %v183
    %187 = vmatprep.subr.bf16.mxu0 0
    %188 = vmatpush1.bf16.msra.mxu0 0
    %189 = vmatprep.subr.bf16.mxu0 0
    %190 = vmatpush1.bf16.msra.mxu0 0
    %191 = vmatprep.subr.bf16.mxu0 0
    %192 = vmatpush1.bf16.msra.mxu0 0
    %193 = vmatprep.subr.bf16.mxu0 0
    %194 = vmatpush1.bf16.msra.mxu0 0
    %195 = vmatprep.subr.bf16.mxu0 0
    %196 = vmatpush1.bf16.msra.mxu0 0
    %197 = vmatprep.subr.bf16.mxu0 0
    %198 = vmatpush1.bf16.msra.mxu0 0
    %199 = vmatprep.subr.bf16.mxu0 0
    %200 = vmatpush1.bf16.msra.mxu0 0
    %201 = vmatprep.subr.bf16.mxu0 0
    %202 = vmatpush1.bf16.msra.mxu0 0
    %203 = vmatprep.subr.bf16.mxu0 0
    %204 = vmatpush1.bf16.msra.mxu0 0
    %205 = vmatprep.subr.bf16.mxu0 0
    %206 = vmatpush1.bf16.msra.mxu0 0
    %207 = vmatprep.subr.bf16.mxu0 0
    %208 = vmatpush1.bf16.msra.mxu0 0
    %209 = vmatprep.subr.bf16.mxu0 0
    %210 = vmatpush1.bf16.msra.mxu0 0
    %211 = vmatprep.subr.bf16.mxu0 0
    %212 = vmatpush1.bf16.msra.mxu0 0
    %213 = vmatprep.subr.bf16.mxu0 0
    %214 = vmatpush1.bf16.msra.mxu0 0
    %215 = vmatprep.subr.bf16.mxu0 0
    %216 = vmatpush1.bf16.msra.mxu0 0
    %217 = vmatprep.mubr.bf16.mxu0 0
    %218 = vmatmul.mubr.bf16.gmra.mrb[0].mxu0 %v179
    %v219 = vpop.f32.mrb[0].mxu0
    %v220 = vadd.f32 0.0, %v219
    %v221 = vpop.f32.mrb[0].mxu0
    %v222 = vpop.f32.mrb[0].mxu0
    %v223 = vpop.f32.mrb[0].mxu0
    %224 = vdwg.mxu0
    %225 = vxpose.xlu0.c.b16.start [1/8] %v160, 128
    %226 = vxpose.xlu0.c.b16.cont [2/8] 0, 128
    %227 = vxpose.xlu0.c.b16.cont [3/8] 0, 128
    %228 = vxpose.xlu0.c.b16.cont [4/8] 0, 128
    %229 = vxpose.xlu0.c.b16.cont [5/8] 0, 128
    %230 = vxpose.xlu0.c.b16.cont [6/8] 0, 128
    %231 = vxpose.xlu0.c.b16.cont [7/8] 0, 128
    %232 = vxpose.xlu0.c.b16.end [8/8] 0, 128
    %v233 = vpop.trf.xlu0
    %v234 = vpop.trf.xlu0
    %v235 = vpop.trf.xlu0
    %v236 = vpop.trf.xlu0
    %v237 = vpop.trf.xlu0
    %v238 = vpop.trf.xlu0
    %v239 = vpop.trf.xlu0
    %v240 = vpop.trf.xlu0
    %v242 = vsel %vm177, %v233, 0
    %v245 = vsel %vm181, %v30, 0
    %247 = vmatprep.subr.bf16.mxu0 0
    %248 = vmatpush1.bf16.msra.mxu0 %v245
    %249 = vmatprep.subr.bf16.mxu0 0
    %250 = vmatpush1.bf16.msra.mxu0 0
    %251 = vmatprep.subr.bf16.mxu0 0
    %252 = vmatpush1.bf16.msra.mxu0 0
    %253 = vmatprep.subr.bf16.mxu0 0
    %254 = vmatpush1.bf16.msra.mxu0 0
    %255 = vmatprep.subr.bf16.mxu0 0
    %256 = vmatpush1.bf16.msra.mxu0 0
    %257 = vmatprep.subr.bf16.mxu0 0
    %258 = vmatpush1.bf16.msra.mxu0 0
    %259 = vmatprep.subr.bf16.mxu0 0
    %260 = vmatpush1.bf16.msra.mxu0 0
    %261 = vmatprep.subr.bf16.mxu0 0
    %262 = vmatpush1.bf16.msra.mxu0 0
    %263 = vmatprep.subr.bf16.mxu0 0
    %264 = vmatpush1.bf16.msra.mxu0 0
    %265 = vmatprep.subr.bf16.mxu0 0
    %266 = vmatpush1.bf16.msra.mxu0 0
    %267 = vmatprep.subr.bf16.mxu0 0
    %268 = vmatpush1.bf16.msra.mxu0 0
    %269 = vmatprep.subr.bf16.mxu0 0
    %270 = vmatpush1.bf16.msra.mxu0 0
    %271 = vmatprep.subr.bf16.mxu0 0
    %272 = vmatpush1.bf16.msra.mxu0 0
    %273 = vmatprep.subr.bf16.mxu0 0
    %274 = vmatpush1.bf16.msra.mxu0 0
    %275 = vmatprep.subr.bf16.mxu0 0
    %276 = vmatpush1.bf16.msra.mxu0 0
    %277 = vmatprep.subr.bf16.mxu0 0
    %278 = vmatpush1.bf16.msra.mxu0 0
    %279 = vmatprep.mubr.bf16.mxu0 0
    %280 = vmatmul.mubr.bf16.gmra.mrb[0].mxu0 %v242
    %v281 = vpop.f32.mrb[0].mxu0
    %v282 = vadd.f32 0.0, %v281
    %v283 = vpop.f32.mrb[0].mxu0
    %v284 = vpop.f32.mrb[0].mxu0
    %v285 = vpop.f32.mrb[0].mxu0
    %286 = vdwg.mxu0
    %v289 = vcombine.low %v220, %v282
    %v291 = vpack.c.bf16 %v289, %v289
    %v292 = vld [vmem:[%s3] sm:$0xf]
    %v293 = vld [vmem:[%s3 + $0x4] sm:$0xf]
    %v294 = vld [vmem:[%s3 + $0x8] sm:$0xf]
    %v295 = vld [vmem:[%s3 + $0xc] sm:$0xf]
    %v300 = vunpack.c.l.b16 %v292
    %v301 = vunpack.c.l.b16 %v293
    %v302 = vunpack.c.l.b16 %v294
    %v303 = vunpack.c.l.b16 %v295
    %v304 = vpack.c.b16 %v301, %v300
    %v305 = vpack.c.b16 %v303, %v302
    %v309 = vsel %vm53, %v291, 0
    %311 = vmatprep.subr.bf16.mxu0 0
    %312 = vmatpush1.bf16.msra.mxu0 %v304
    %313 = vmatprep.subr.bf16.mxu0 0
    %314 = vmatpush1.bf16.msra.mxu0 %v305
    %315 = vmatprep.subr.bf16.mxu0 0
    %316 = vmatpush1.bf16.msra.mxu0 0
    %317 = vmatprep.subr.bf16.mxu0 0
    %318 = vmatpush1.bf16.msra.mxu0 0
    %319 = vmatprep.subr.bf16.mxu0 0
    %320 = vmatpush1.bf16.msra.mxu0 0
    %321 = vmatprep.subr.bf16.mxu0 0
    %322 = vmatpush1.bf16.msra.mxu0 0
    %323 = vmatprep.subr.bf16.mxu0 0
    %324 = vmatpush1.bf16.msra.mxu0 0
    %325 = vmatprep.subr.bf16.mxu0 0
    %326 = vmatpush1.bf16.msra.mxu0 0
    %327 = vmatprep.subr.bf16.mxu0 0
    %328 = vmatpush1.bf16.msra.mxu0 0
    %329 = vmatprep.subr.bf16.mxu0 0
    %330 = vmatpush1.bf16.msra.mxu0 0
    %331 = vmatprep.subr.bf16.mxu0 0
    %332 = vmatpush1.bf16.msra.mxu0 0
    %333 = vmatprep.subr.bf16.mxu0 0
    %334 = vmatpush1.bf16.msra.mxu0 0
    %335 = vmatprep.subr.bf16.mxu0 0
    %336 = vmatpush1.bf16.msra.mxu0 0
    %337 = vmatprep.subr.bf16.mxu0 0
    %338 = vmatpush1.bf16.msra.mxu0 0
    %339 = vmatprep.subr.bf16.mxu0 0
    %340 = vmatpush1.bf16.msra.mxu0 0
    %341 = vmatprep.subr.bf16.mxu0 0
    %342 = vmatpush1.bf16.msra.mxu0 0
    %343 = vmatprep.mubr.bf16.mxu0 0
    %344 = vmatmul.mubr.bf16.gmra.mrb[0].mxu0 %v309
    %v345 = vpop.f32.mrb[0].mxu0
    %v346 = vadd.f32 0.0, %v345
    %v347 = vpop.f32.mrb[0].mxu0
    %v348 = vpop.f32.mrb[0].mxu0
    %v349 = vpop.f32.mrb[0].mxu0
    %350 = vdwg.mxu0
    %v352 = vcombine.high %v346, %v346
    %v354 = vld [vmem:[%s4] sm:$0xf]
    %v355 = vadd.f32 %v346, %v354
    %v356 = vadd.f32 %v352, %v354
    %vm357 = vcmask 60416
    %v358 = vsel %vm357, %v355, -inf
    %359 = vmax.xlane.f32.xlu0 %v358
    %v360 = vpop.xlane.xlu0 %359
    %v361 = vsel %vm357, %v356, -inf
    %362 = vmax.xlane.f32.xlu0 %v361
    %v363 = vpop.xlane.xlu0 %362
    %v364 = vsub.f32 %v355, %v360
    %v365 = vsub.f32 %v356, %v363
    %v366 = vmul.f32 %v364, 1.442695
    %v367 = vpow.pop %v366
    %v368 = vmul.f32 %v365, 1.442695
    %v369 = vpow.pop %v368
    %v370 = vsel %vm357, %v367, 0.0
    %371 = vadd.xlane.f32.xlu0 %v370
    %v372 = vpop.xlane.xlu0 %371
    %v373 = vsel %vm357, %v369, 0.0
    %374 = vadd.xlane.f32.xlu0 %v373
    %v375 = vpop.xlane.xlu0 %374
    %v376 = vrcp.pop %v372
    %v377 = vrcp.pop %v375
    %v378 = vmul.f32 %v367, %v376
    %v379 = vmul.f32 %v369, %v377
    %v380 = vsel %vm357, %v378, 0.0
    %v381 = vrot.slane %v380, 4
    %v382 = vadd.f32 %v380, %v381
    %v383 = vrot.slane %v382, 2
    %v384 = vadd.f32 %v382, %v383
    %v385 = vrot.slane %v384, 1
    %v386 = vadd.f32 %v384, %v385
    %v387 = vsel %vm357, %v379, 0.0
    %v388 = vrot.slane %v387, 4
    %v389 = vadd.f32 %v387, %v388
    %v390 = vrot.slane %v389, 2
    %v391 = vadd.f32 %v389, %v390
    %v392 = vrot.slane %v391, 1
    %v393 = vadd.f32 %v391, %v392
    %vm396 = vcmask 1041409
    %v397 = vsel %vm396, %v393, %v386
    %vm399 = vcmask 58368
    %400 = vst.msk [vmem:[#allocation2] sm:$0x3] %vm399, %v397
    %vm401 = vcmp.eq.f32.partialorder %v355, %v360
    %vm402 = vcmp.eq.f32.partialorder %v356, %v363
    %v403 = vld [vmem:[%s5] sm:$0x1]
    %v404 = vlaneseq
    %v405 = vshrl.u32 %v404, 7
    %v406 = vsub.s32 0, %v405
    %v407 = vrot.slane %v403, %v406
    %v408 = vsel %vm401, %v407, 8
    %v409 = vsel %vm402, %v407, 8
    %v410 = vsel %vm357, %v408, 2147483647
    %v411 = vand.u32 %v410, 65535
    %v412 = vshra.s32 %v410, 16
    %v413 = vcvt.s32.f32 %v411
    %v414 = vcvt.s32.f32 %v412
    %415 = vmin.xlane.f32.xlu0 %v414
    %v416 = vpop.xlane.xlu0 %415
    %vm417 = vcmp.eq.f32.partialorder %v414, %v416
    %v418 = vsel %vm417, %v413, inf
    %419 = vmin.xlane.f32.xlu0 %v418
    %v420 = vpop.xlane.xlu0 %419
    %v421 = vcvt.f32.s32 %v420
    %v422 = vcvt.f32.s32 %v416
    %v423 = vshll.u32 %v422, 16
    %v424 = vadd.s32 %v423, %v421
    %v425 = vsel %vm357, %v409, 2147483647
    %v426 = vand.u32 %v425, 65535
    %v427 = vshra.s32 %v425, 16
    %v428 = vcvt.s32.f32 %v426
    %v429 = vcvt.s32.f32 %v427
    %430 = vmin.xlane.f32.xlu0 %v429
    %v431 = vpop.xlane.xlu0 %430
    %vm432 = vcmp.eq.f32.partialorder %v429, %v431
    %v433 = vsel %vm432, %v428, inf
    %434 = vmin.xlane.f32.xlu0 %v433
    %v435 = vpop.xlane.xlu0 %434
    %v436 = vcvt.f32.s32 %v435
    %v437 = vcvt.f32.s32 %v431
    %v438 = vshll.u32 %v437, 16
    %v439 = vadd.s32 %v438, %v436
    %v440 = vlaneseq
    %v441 = vand.u32 %v440, 127
    %v442 = vlaneseq
    %v443 = vshrl.u32 %v442, 7
    %v444 = vsub.s32 %v441, %v443
    %v445 = vrot.slane %v424, %v444
    %v446 = vlaneseq
    %v447 = vshrl.u32 %v446, 7
    %v448 = vsub.s32 %v441, %v447
    %v449 = vrot.slane %v439, %v448
    %v450 = vsel %vm396, %v449, %v445
    %vm451 = vcmask 25600
    %452 = vst.msk [vmem:[#allocation4] sm:$0x3] %vm451, %v450
    // Predicated region
    $region26: #{tpu_custom_call.1} parent=1 // pred_check
      _
    $region27: #{tpu_custom_call.1} parent=1 // pred_check_branch
      %454 = sbr.rel (0) target = $region29
    $region28: #{tpu_custom_call.1} parent=1 // pred_region
      _
    $region29: #{tpu_custom_call.1} parent=1 // pred_fallthru
      _
    // Predicated region
    $region30: #{tpu_custom_call.1} parent=1 // pred_check
      _
    $region31: #{tpu_custom_call.1} parent=1 // pred_check_branch
      %456 = sbr.rel (0) target = $region33
    $region32: #{tpu_custom_call.1} parent=1 // pred_region
      %s458 = ssub.s32 32, 32
      %459 = vsyncadd [#allocation3], %s458
      %s461 = sshll.u32 [#allocation2], 4
      %s462 = int_to_ptr.vmem [resolvable:$true] %s461
      %464 = dma.vmem_to_hbm [thread:$0]  %s462, 32, %s7, [#allocation3]
    $region33: #{tpu_custom_call.1} parent=1 // pred_fallthru
      _
    // Predicated region
    $region34: #{tpu_custom_call.1} parent=1 // pred_check
      _
    $region35: #{tpu_custom_call.1} parent=1 // pred_check_branch
      %466 = sbr.rel (0) target = $region37
    $region36: #{tpu_custom_call.1} parent=1 // pred_region
      %s468 = ssub.s32 32, 32
      %469 = vsyncadd [#allocation5], %s468
      %s471 = sshll.u32 [#allocation4], 4
      %s472 = int_to_ptr.vmem [resolvable:$true] %s471
      %474 = dma.vmem_to_hbm [thread:$0]  %s472, 32, %s8, [#allocation5]
    $region37: #{tpu_custom_call.1} parent=1 // pred_fallthru
      _
    // Predicated region
    $region38: #{tpu_custom_call.1} parent=1 // pred_check
      _
    $region39: #{tpu_custom_call.1} parent=1 // pred_check_branch
      %476 = sbr.rel (0) target = $region41
    $region40: #{tpu_custom_call.1} parent=1 // pred_region
      _
    $region41: #{tpu_custom_call.1} parent=1 // pred_fallthru
      _
    // Predicated region
    $region42: #{tpu_custom_call.1} parent=1 // pred_check
      _
    $region43: #{tpu_custom_call.1} parent=1 // pred_check_branch
      %478 = sbr.rel (0) target = $region45
    $region44: #{tpu_custom_call.1} parent=1 // pred_region
      %479 = dma.done [#allocation3], 32
    $region45: #{tpu_custom_call.1} parent=1 // pred_fallthru
      _
    // Predicated region
    $region46: #{tpu_custom_call.1} parent=1 // pred_check
      _
    $region47: #{tpu_custom_call.1} parent=1 // pred_check_branch
      %481 = sbr.rel (0) target = $region49
    $region48: #{tpu_custom_call.1} parent=1 // pred_region
      %482 = dma.done [#allocation5], 32
    $region49: #{tpu_custom_call.1} parent=1 // pred_fallthru
      _
    %483 = vsyncpa [#allocation3], 1
    %484 = vsyncpa [#allocation5], 1

</llo_original>
